<compile_context>
chip_gen: v6e
topology: v6e:2x2x1
jax: 0.10.0
libtpu: 0.0.40
codegen_flags: <defaults>
</compile_context>

<pallas_src>
import jax
import jax.numpy as jnp
import numpy as np
from jax.experimental import pallas as pl
from jax.experimental.pallas import tpu as pltpu


def _st_kernel(coords_ref, src_ref, o_ref):
    # coords_ref: (2, Tp)   sample coords; row 0 = y (H axis), row 1 = x (W axis)
    # src_ref:    (C*H, W)  source image, channel+row folded into the MXU M axis
    # o_ref:      (C, Tp)   warped output tile
    f32 = jnp.float32
    CH, W = src_ref.shape
    C, Tp = o_ref.shape
    H = CH // C

    y = coords_ref[0:1, :]                                      # (1, Tp)
    x = coords_ref[1:2, :]                                      # (1, Tp)

    # Closed-form separable bilinear hat weights max(0, 1 - |q - coord|);
    # out-of-range coords (incl. the -2.0 pad sentinel) get zero weight, which
    # reproduces padding_mode='zeros' exactly.
    ww = jax.lax.broadcasted_iota(jnp.int32, (W, Tp), 0).astype(f32)
    hh = jax.lax.broadcasted_iota(jnp.int32, (H, Tp), 0).astype(f32)
    wx = jnp.maximum(0.0, 1.0 - jnp.abs(ww - x))                 # (W, Tp)
    wy = jnp.maximum(0.0, 1.0 - jnp.abs(hh - y))                 # (H, Tp)

    # Stage 1 (MXU): contract the W axis once for all channels and source rows.
    tmp = jnp.dot(src_ref[...], wx,
                  preferred_element_type=f32,
                  precision=jax.lax.Precision.HIGHEST)           # (C*H, Tp)

    # Stage 2 (VPU multiply + sublane reduce): weighted sum over the H axis.
    tmp = tmp.reshape(C, H, Tp)
    o_ref[...] = jnp.sum(tmp * wy[None, :, :], axis=1).astype(o_ref.dtype)


def _round_up(x, m):
    return (x + m - 1) // m * m


def spatial_transformer(src, flow):
    """src: (N, C, H, W) f32, flow: (N, 2, H, W) f32 -> warped (N, C, H, W) f32."""
    N, C, H, W = src.shape
    assert flow.shape == (N, 2, H, W)
    HW = H * W
    CH = C * H

    # Lane-dense output-pixel tile: multiple of 128, capped so the (C*H, Tp) f32
    # MXU result stays <= ~8 MiB (fits v7x's 64 MiB VMEM together with the
    # double-buffered coords / src / out blocks; v5e/v6e have 128 MiB).
    hw128 = _round_up(HW, 128)
    cap = max(128, ((8 << 20) // (CH * 4)) // 128 * 128)
    tp = max(128, min(2048, cap, hw128))
    # Keep >= 2 total grid steps so both v7x TensorCores get work.
    if N * (_round_up(HW, tp) // tp) < 2 and tp > 128:
        tp = max(128, (tp // 2) // 128 * 128)
    HWp = _round_up(HW, tp)
    pad = HWp - HW
    n_t = HWp // tp

    # Batch-parallel coordinate math hoisted out of the kernel. The torch
    # normalize / grid_sample un-normalize round trip is an algebraic identity
    # under align_corners=True, so coords are plain pixel coordinates.
    gh = jnp.arange(H, dtype=jnp.float32)[None, :, None]
    gw = jnp.arange(W, dtype=jnp.float32)[None, None, :]
    coords = jnp.stack([gh + flow[:, 0].astype(jnp.float32),
                        gw + flow[:, 1].astype(jnp.float32)], axis=1)  # (N, 2, H, W)
    # Pad with -2.0: guaranteed out of range -> zero hat weights -> zero output.
    coords = jnp.pad(coords.reshape(N, 2, HW), ((0, 0), (0, 0), (0, pad)),
                     constant_values=-2.0)

    src_f = src.reshape(N, CH, W).astype(jnp.float32)

    out = pl.pallas_call(
        _st_kernel,
        out_shape=jax.ShapeDtypeStruct((N, C, HWp), jnp.float32),
        grid_spec=pltpu.PrefetchScalarGridSpec(
            num_scalar_prefetch=0,
            grid=(N, n_t),
            in_specs=[
                pl.BlockSpec((None, 2, tp), lambda n, t: (n, 0, t)),   # coords tile
                pl.BlockSpec((None, CH, W), lambda n, t: (n, 0, 0)),   # per-batch source
            ],
            out_specs=pl.BlockSpec((None, C, tp), lambda n, t: (n, 0, t)),
        ),
        compiler_params=pltpu.CompilerParams(
            dimension_semantics=("parallel", "parallel"),  # batch & pixel tiles independent
            vmem_limit_bytes=48 * 1024 * 1024),
    )(coords, src_f)

    return out[:, :, :HW].reshape(N, C, H, W)


def _reference(src, flow):
    """Pure-JAX mirror of the voxelmorph SpatialTransformer forward (2-D, bilinear)."""
    N, C, H, W = src.shape
    gh = jnp.arange(H, dtype=jnp.float32)[None, :, None]
    gw = jnp.arange(W, dtype=jnp.float32)[None, None, :]
    y = gh + flow[:, 0]
    x = gw + flow[:, 1]
    yn = 2.0 * (y / (H - 1) - 0.5)
    xn = 2.0 * (x / (W - 1) - 0.5)
    y = (yn + 1.0) * 0.5 * (H - 1)
    x = (xn + 1.0) * 0.5 * (W - 1)
    y0 = jnp.floor(y)
    x0 = jnp.floor(x)
    fy = y - y0
    fx = x - x0
    src_f = src.reshape(N, C, H * W)

    def tap(yi, xi):
        valid = ((yi >= 0) & (yi < H) & (xi >= 0) & (xi < W)).astype(src.dtype)
        idx = (jnp.clip(yi, 0, H - 1) * W + jnp.clip(xi, 0, W - 1)).astype(jnp.int32)
        g = jnp.take_along_axis(src_f, idx.reshape(N, 1, H * W), axis=2)
        return g.reshape(N, C, H, W) * valid[:, None]

    return (tap(y0, x0) * ((1 - fy) * (1 - fx))[:, None]
            + tap(y0, x0 + 1) * ((1 - fy) * fx)[:, None]
            + tap(y0 + 1, x0) * (fy * (1 - fx))[:, None]
            + tap(y0 + 1, x0 + 1) * (fy * fx)[:, None])


if __name__ == "__main__":
    N, C, H, W = 2, 4, 16, 16
    key = jax.random.PRNGKey(0)
    k_src, k_flow = jax.random.split(key)
    # SpatialTransformer has no learned parameters; its only buffer (the identity
    # meshgrid) is folded into the precomputed coords in the wrapper.
    src = jax.random.normal(k_src, (N, C, H, W), dtype=jnp.float32)
    flow = jax.random.normal(k_flow, (N, 2, H, W), dtype=jnp.float32) * 3.0

    out = spatial_transformer(src, flow)
    out = jax.block_until_ready(out)

    ref = _reference(src, flow)
    np.testing.assert_allclose(np.asarray(out), np.asarray(ref),
                               atol=1e-4, rtol=1e-4)
    print("KERNEL_OK")
</pallas_src>

<mosaic_0001>
module attributes {stable_mosaic.version = 11 : i64} {
  func.func @_st_kernel(%arg0: i32, %arg1: i32, %arg2: memref<1x2x256xf32, #tpu.memory_space<vmem>>, %arg3: memref<1x64x16xf32, #tpu.memory_space<vmem>>, %arg4: memref<1x4x256xf32, #tpu.memory_space<vmem>>) attributes {dimension_semantics = [#tpu.dimension_semantics<parallel>, #tpu.dimension_semantics<parallel>], iteration_bounds = array<i64: 2, 1>, scalar_prefetch = 0 : i64, scratch_operands = 0 : i64, tpu.core_type = #tpu.core_type<tc>, window_params = [{transform_indices = @transform_0, window_bounds = array<i64: 1, 2, 256>}, {transform_indices = @transform_1, window_bounds = array<i64: 1, 64, 16>}, {transform_indices = @transform_2, window_bounds = array<i64: 1, 4, 256>}]} {
    %c0 = arith.constant 0 : index
    %c0_0 = arith.constant 0 : index
    %c0_1 = arith.constant 0 : index
    %0 = vector.load %arg2[%c0, %c0_0, %c0_1] : memref<1x2x256xf32, #tpu.memory_space<vmem>>, vector<1x1x256xf32>
    %1 = vector.shape_cast %0 : vector<1x1x256xf32> to vector<1x256xf32>
    %c0_2 = arith.constant 0 : index
    %c1 = arith.constant 1 : index
    %c0_3 = arith.constant 0 : index
    %2 = vector.load %arg2[%c0_2, %c1, %c0_3] : memref<1x2x256xf32, #tpu.memory_space<vmem>>, vector<1x1x256xf32>
    %3 = vector.shape_cast %2 : vector<1x1x256xf32> to vector<1x256xf32>
    %4 = tpu.iota {dimensions = array<i32: 0>} : vector<16x256xi32>
    %5 = arith.sitofp %4 : vector<16x256xi32> to vector<16x256xf32>
    %6 = tpu.iota {dimensions = array<i32: 0>} : vector<16x256xi32>
    %7 = arith.sitofp %6 : vector<16x256xi32> to vector<16x256xf32>
    %8 = vector.broadcast %3 : vector<1x256xf32> to vector<16x256xf32>
    %9 = arith.subf %5, %8 : vector<16x256xf32>
    %10 = math.absf %9 : vector<16x256xf32>
    %cst = arith.constant 1.000000e+00 : f32
    %11 = vector.broadcast %cst : f32 to vector<16x256xf32>
    %12 = arith.subf %11, %10 : vector<16x256xf32>
    %cst_4 = arith.constant 0.000000e+00 : f32
    %13 = vector.broadcast %cst_4 : f32 to vector<16x256xf32>
    %14 = arith.maximumf %13, %12 : vector<16x256xf32>
    %15 = vector.broadcast %1 : vector<1x256xf32> to vector<16x256xf32>
    %16 = arith.subf %7, %15 : vector<16x256xf32>
    %17 = math.absf %16 : vector<16x256xf32>
    %cst_5 = arith.constant 1.000000e+00 : f32
    %18 = vector.broadcast %cst_5 : f32 to vector<16x256xf32>
    %19 = arith.subf %18, %17 : vector<16x256xf32>
    %cst_6 = arith.constant 0.000000e+00 : f32
    %20 = vector.broadcast %cst_6 : f32 to vector<16x256xf32>
    %21 = arith.maximumf %20, %19 : vector<16x256xf32>
    %c0_7 = arith.constant 0 : index
    %c0_8 = arith.constant 0 : index
    %c0_9 = arith.constant 0 : index
    %22 = vector.load %arg3[%c0_7, %c0_8, %c0_9] : memref<1x64x16xf32, #tpu.memory_space<vmem>>, vector<1x64x16xf32>
    %23 = vector.shape_cast %22 : vector<1x64x16xf32> to vector<64x16xf32>
    %cst_10 = arith.constant dense<0.000000e+00> : vector<64x256xf32>
    %24 = tpu.matmul %23, %14, %cst_10 {dimension_numbers = #tpu.dot_dimension_numbers<[1], [0], [0], [1], [0, 0, 1, 1], [], []>, precision = #tpu.contract_precision<fp32>} : vector<64x16xf32>, vector<16x256xf32>, vector<64x256xf32> -> vector<64x256xf32>
    %25 = vector.shape_cast %24 : vector<64x256xf32> to vector<4x16x256xf32>
    %26 = vector.shape_cast %21 : vector<16x256xf32> to vector<1x16x256xf32>
    %27 = vector.broadcast %26 : vector<1x16x256xf32> to vector<4x16x256xf32>
    %28 = arith.mulf %25, %27 : vector<4x16x256xf32>
    %cst_11 = arith.constant dense<0.000000e+00> : vector<4x256xf32>
    %29 = vector.multi_reduction <add>, %28, %cst_11 [1] : vector<4x16x256xf32> to vector<4x256xf32>
    %c0_12 = arith.constant 0 : index
    %c0_13 = arith.constant 0 : index
    %c0_14 = arith.constant 0 : index
    %30 = vector.load %arg4[%c0_12, %c0_13, %c0_14] : memref<1x4x256xf32, #tpu.memory_space<vmem>>, vector<1x4x256xf32>
    %31 = vector.shape_cast %30 : vector<1x4x256xf32> to vector<4x256xf32>
    %32 = vector.shape_cast %29 : vector<4x256xf32> to vector<1x4x256xf32>
    tpu.vector_store %arg4[%c0_12, %c0_13, %c0_14], %32 {strides = array<i32>} : memref<1x4x256xf32, #tpu.memory_space<vmem>>, vector<1x4x256xf32>,
    return
  }
  func.func @transform_0(%arg0: i32, %arg1: i32) -> (i32, i32, i32) {
    %c0_i32 = arith.constant 0 : i32
    %c0_i32_0 = arith.constant 0 : i32
    return %arg0, %c0_i32, %arg1 : i32, i32, i32
  }
  func.func @transform_1(%arg0: i32, %arg1: i32) -> (i32, i32, i32) {
    %c0_i32 = arith.constant 0 : i32
    %c0_i32_0 = arith.constant 0 : i32
    %c0_i32_1 = arith.constant 0 : i32
    return %arg0, %c0_i32, %c0_i32_0 : i32, i32, i32
  }
  func.func @transform_2(%arg0: i32, %arg1: i32) -> (i32, i32, i32) {
    %c0_i32 = arith.constant 0 : i32
    %c0_i32_0 = arith.constant 0 : i32
    return %arg0, %c0_i32, %arg1 : i32, i32, i32
  }
}

</mosaic_0001>

<llo_original>
// kernel: tpu_custom_call.1
$region0: #{tpu_custom_call.1}
  #allocation0 [shape = 'u32[]', space=smem, size = 0x4, offset = 0x4, fixed_abs, tag = 'smem constant byte address 0x4 - core index']
  #allocation1 [shape = 'u32[144,128]{1,0:T(1,128)}', space=vmem, size = 0x12000, scoped, tag = 'internal scratch']
  %s0 = inlined_call_operand.vmem [shape: f32[2,2,256], index: 0, kind: input, shape index: {}]
  %s1 = inlined_call_operand.vmem [shape: f32[2,64,16], index: 1, kind: input, shape index: {}]
  %s2 = inlined_call_operand.hbm [shape: f32[2,4,256], index: 2, kind: output, shape index: {}]
  %s3 = sld [smem:[#allocation0]]
  $region41: #{tpu_custom_call.1} parent=0
    _
  %s5 = ssub.s32 1, %s3
  %s6 = scalar_select 0, %s5, %s3
  $region1: #{tpu_custom_call.1} parent=0
    #allocation2 [shape = 'u8[8192]{0}', space=vmem, size = 0x2000, scoped, tag = 'output window, operand 0']
    #allocation3 [shape = 's32[2]{0}', space=sflag, size = 0x8, scoped, tag = 'scoped memory for tpu_custom_call.1']
    %7 = vsyncpa [#allocation3], 0
    %s8 = scalar_lea.sflag [#allocation3], 1
    %9 = vsyncpa %s8, 0
    loop: start=0, step=1, limit=4
    $region2: #{tpu_custom_call.1} parent=1 // loop_pre_header
      _
    $region3: #{tpu_custom_call.1} parent=1 // loop_header
      %s11 = sphi 0, %s15
      %p12 = scmp.ge.s32.totalorder %s11, 4
      %s18 = sphi 0, %s30
      %s19 = sphi 0, %s26
      %s20 = sphi 0, %s18
      %s21 = sphi 0, %s19
      %s22 = sphi 0, %s20
      %s23 = sphi 0, %s21
      %s35 = sphi 0, %s37
      %s38 = sphi 0, %s35
      %s39 = sphi 0, %s38
      %s55 = sphi 0, %s39
      %s61 = sphi 0, %s63
      %s64 = sphi 0, %s61
      %s65 = sphi 0, %s64
      %s81 = sphi 0, %s65
      %s89 = sphi 0, %s91
      %s92 = sphi 0, %s89
      %s93 = sphi 0, %s92
      %s109 = sphi 0, %s93
    $region4: #{tpu_custom_call.1} parent=1 // loop_header_branch
      %14 = sbr.rel (%p12) target = $region8
    $region5: #{tpu_custom_call.1} parent=1 // loop_body
      %s16 = ssub.s32 %s11, 1
      %s17 = ssub.s32 %s11, 2
      %s24 = sadd.s32 1, %s19
      %p25 = scmp.ge.s32.totalorder %s24, 1
      %s26 = scalar_select %p25, 0, %s24
      %s27 = sadd.s32 1, %s18
      %s28 = scalar_select %p25, %s27, %s18
      %p29 = scmp.ge.s32.totalorder %s28, 2
      %s30 = scalar_select %p29, 0, %s28
      %s31 = ssub.s32 %s18, %s30
      %s32 = ssub.s32 %s19, %s26
      %s33 = sor.u32 %s31, %s32
      %p34 = scmp.eq.s32.totalorder %s33, 0
      %s36 = sadd.s32 %s35, 1
      %s37 = scalar_select %p34, %s35, %s36
      %p40 = pneg %p34
      %p41 = scmp.eq.s32.totalorder %s11, 1
      %p42 = por %p40, %p41
      %p43 = scmp.ne.s32.totalorder %s35, %s38
      %p44 = scmp.eq.s32.totalorder %s11, 0
      %p45 = por %p43, %p44
      %p46 = scmp.ne.s32.totalorder %s35, %s38
      %p47 = scmp.eq.s32.totalorder %s16, 1
      %p48 = por %p46, %p47
      %p49 = scmp.ne.s32.totalorder %s38, %s39
      %p50 = scmp.eq.s32.totalorder %s16, 0
      %p51 = por %p49, %p50
      %p52 = scmp.ne.s32.totalorder %s38, %s39
      %p53 = scmp.eq.s32.totalorder %s17, 1
      %p54 = por %p52, %p53
      %p56 = scmp.ne.s32.totalorder %s39, %s55
      %p57 = scmp.eq.s32.totalorder %s17, 0
      %p58 = por %p56, %p57
      %s59 = ssub.s32 %s18, %s30
      %p60 = scmp.eq.s32.totalorder %s59, 0
      %s62 = sadd.s32 %s61, 1
      %s63 = scalar_select %p60, %s61, %s62
      %p66 = pneg %p60
      %p67 = scmp.eq.s32.totalorder %s11, 1
      %p68 = por %p66, %p67
      %p69 = scmp.ne.s32.totalorder %s61, %s64
      %p70 = scmp.eq.s32.totalorder %s11, 0
      %p71 = por %p69, %p70
      %p72 = scmp.ne.s32.totalorder %s61, %s64
      %p73 = scmp.eq.s32.totalorder %s16, 1
      %p74 = por %p72, %p73
      %p75 = scmp.ne.s32.totalorder %s64, %s65
      %p76 = scmp.eq.s32.totalorder %s16, 0
      %p77 = por %p75, %p76
      %p78 = scmp.ne.s32.totalorder %s64, %s65
      %p79 = scmp.eq.s32.totalorder %s17, 1
      %p80 = por %p78, %p79
      %p82 = scmp.ne.s32.totalorder %s65, %s81
      %p83 = scmp.eq.s32.totalorder %s17, 0
      %p84 = por %p82, %p83
      %s85 = ssub.s32 %s18, %s30
      %s86 = ssub.s32 %s19, %s26
      %s87 = sor.u32 %s85, %s86
      %p88 = scmp.eq.s32.totalorder %s87, 0
      %s90 = sadd.s32 %s89, 1
      %s91 = scalar_select %p88, %s89, %s90
      %p94 = pneg %p88
      %p95 = scmp.eq.s32.totalorder %s11, 1
      %p96 = por %p94, %p95
      %p97 = scmp.ne.s32.totalorder %s89, %s92
      %p98 = scmp.eq.s32.totalorder %s11, 0
      %p99 = por %p97, %p98
      %p100 = scmp.ne.s32.totalorder %s89, %s92
      %p101 = scmp.eq.s32.totalorder %s16, 1
      %p102 = por %p100, %p101
      %p103 = scmp.ne.s32.totalorder %s92, %s93
      %p104 = scmp.eq.s32.totalorder %s16, 0
      %p105 = por %p103, %p104
      %p106 = scmp.ne.s32.totalorder %s92, %s93
      %p107 = scmp.eq.s32.totalorder %s17, 1
      %p108 = por %p106, %p107
      %p110 = scmp.ne.s32.totalorder %s93, %s109
      %p111 = scmp.eq.s32.totalorder %s17, 0
      %p112 = por %p110, %p111
      %p113 = scmp.le.s32.totalorder 1, %s11
      %p114 = scmp.lt.s32.totalorder %s11, 3
      %p115 = pnand %p113, %p114
      %p116 = pneg %p115
      // Predicated region
      $region9: #{tpu_custom_call.1} parent=5 // pred_check
        _
      $region10: #{tpu_custom_call.1} parent=5 // pred_check_branch
        %118 = sbr.rel (%p115) target = $region12
      $region11: #{tpu_custom_call.1} parent=5 // pred_region
        %s119 = ssub.s32 %s11, 1
      $region12: #{tpu_custom_call.1} parent=5 // pred_fallthru
        _
      %p120 = scmp.lt.s32.totalorder %s11, 2
      // Predicated region
      $region13: #{tpu_custom_call.1} parent=5 // pred_check
        %p121 = pneg %p120
      $region14: #{tpu_custom_call.1} parent=5 // pred_check_branch
        %123 = sbr.rel (%p121) target = $region16
      $region15: #{tpu_custom_call.1} parent=5 // pred_region
        // Predicated region
        $region17: #{tpu_custom_call.1} parent=15 // pred_check
          %p124 = pneg %p45
        $region18: #{tpu_custom_call.1} parent=15 // pred_check_branch
          %126 = sbr.rel (%p124) target = $region20
        $region19: #{tpu_custom_call.1} parent=15 // pred_region
          %s127 = smul.u32 2, %s19
          %p128 = scmp.lt.s32.totalorder %s18, 1
          %s129 = scalar_select %p128, %s18, 1
          %p130 = scmp.lt.s32.totalorder %s127, 1
          %s131 = scalar_select %p130, %s127, 1
          %s132 = smul.addr %s129, 2
          %s133 = sadd.s32 %s131, %s132
          %s134 = smul.addr %s133, 2
          %s135 = scalar_lea.vmem %s0, %s134
          %s136 = smul.u32 2, %s19
        $region20: #{tpu_custom_call.1} parent=15 // pred_fallthru
          _
        // Predicated region
        $region21: #{tpu_custom_call.1} parent=15 // pred_check
          %p137 = pneg %p71
        $region22: #{tpu_custom_call.1} parent=15 // pred_check_branch
          %139 = sbr.rel (%p137) target = $region24
        $region23: #{tpu_custom_call.1} parent=15 // pred_region
          %p140 = scmp.lt.s32.totalorder %s18, 1
          %s141 = scalar_select %p140, %s18, 1
          %s142 = smul.addr %s141, 8
          %s143 = smul.addr %s142, 8
          %s144 = scalar_lea.vmem %s1, %s143
        $region24: #{tpu_custom_call.1} parent=15 // pred_fallthru
          _
      $region16: #{tpu_custom_call.1} parent=5 // pred_fallthru
        _
      %p145 = scmp.le.s32.totalorder 1, %s11
      %p146 = scmp.lt.s32.totalorder %s11, 3
      %p147 = pnand %p145, %p146
      %p148 = pneg %p147
      // Predicated region
      $region25: #{tpu_custom_call.1} parent=5 // pred_check
        _
      $region26: #{tpu_custom_call.1} parent=5 // pred_check_branch
        %150 = sbr.rel (%p147) target = $region28
      $region27: #{tpu_custom_call.1} parent=5 // pred_region
        %s151 = ssub.s32 %s11, 1
        %s152 = smul.u32 2, %s21
        %p153 = scmp.lt.s32.totalorder %s20, 1
        %s154 = scalar_select %p153, %s20, 1
        %p155 = scmp.lt.s32.totalorder %s152, 1
        %s156 = scalar_select %p155, %s152, 1
        %s157 = smul.addr %s154, 2
        %s158 = sadd.s32 %s156, %s157
        %s159 = smul.addr %s158, 2
        %s160 = scalar_lea.vmem %s0, %s159
        %p161 = pneg %p51
        %p162 = pneg %p48
        %p163 = scmp.lt.s32.totalorder %s20, 1
        %s164 = scalar_select %p163, %s20, 1
        %s165 = smul.addr %s164, 8
        %s166 = smul.addr %s165, 8
        %s167 = scalar_lea.vmem %s1, %s166
        %p168 = pneg %p77
        %p169 = pneg %p74
        %p170 = pneg %p105
        %p171 = pneg %p102
        %s172 = sand.u32 %s92, 1
        %s173 = scalar_lea.sflag [#allocation3], %s172
        %s174 = sand.u32 %s92, 1
        %s175 = smul.addr %s174, 8
        %s176 = scalar_lea.vmem [#allocation2], %s175
        %s177 = smul.u32 2, %s21
        %p178 = scmp.lt.s32.totalorder %s20, 1
        %s179 = scalar_select %p178, %s20, 1
        %p180 = scmp.lt.s32.totalorder %s177, 1
        %s181 = scalar_select %p180, %s177, 1
        %s182 = smul.addr %s179, 2
        %s183 = sadd.s32 %s181, %s182
        %s184 = smul.addr %s183, 2
        %s185 = scalar_lea.vmem %s0, %s184
        %s186 = smul.u32 2, %s21
        %p187 = scmp.lt.s32.totalorder %s20, 1
        %s188 = scalar_select %p187, %s20, 1
        %s189 = smul.addr %s188, 8
        %s190 = smul.addr %s189, 8
        %s191 = scalar_lea.vmem %s1, %s190
        %s192 = smul.u32 2, %s21
        %v193 = vld [vmem:[%s185] ss:$2 sm:$0x3]
        %s194 = scalar_lea.vmem %s185, 1
        %v195 = vld [vmem:[%s194] ss:$2 sm:$0x3]
        %v196 = vlaneseq
        %v197 = vshrl.u32 %v196, 7
        %v198 = vadd.s32 %v197, 8
        %v199 = vcvt.s32.f32 %v197
        %v200 = vcvt.s32.f32 %v198
        %v202 = vlaneseq
        %v203 = vshrl.u32 %v202, 7
        %v204 = vsub.s32 0, %v203
        %v205 = vrot.slane %v195, %v204
        %v206 = vlaneseq
        %v207 = vshrl.u32 %v206, 7
        %v208 = vsub.s32 1, %v207
        %v209 = vrot.slane %v195, %v208
        %v212 = vsub.f32 %v199, %v205
        %v213 = vsub.f32 %v199, %v209
        %v214 = vsub.f32 %v200, %v205
        %v215 = vsub.f32 %v200, %v209
        %v216 = vand.u32 2147483647, %v212
        %v217 = vand.u32 2147483647, %v213
        %v218 = vand.u32 2147483647, %v214
        %v219 = vand.u32 2147483647, %v215
        %v220 = vsub.f32 1.0, %v216
        %v221 = vsub.f32 1.0, %v217
        %v222 = vsub.f32 1.0, %v218
        %v223 = vsub.f32 1.0, %v219
        %v224 = vmax.f32 %v220, 0.0
        %v225 = vmax.f32 %v221, 0.0
        %v226 = vmax.f32 %v222, 0.0
        %v227 = vmax.f32 %v223, 0.0
        %v229 = vlaneseq
        %v230 = vshrl.u32 %v229, 7
        %v231 = vsub.s32 0, %v230
        %v232 = vrot.slane %v193, %v231
        %v233 = vlaneseq
        %v234 = vshrl.u32 %v233, 7
        %v235 = vsub.s32 1, %v234
        %v236 = vrot.slane %v193, %v235
        %v239 = vsub.f32 %v199, %v232
        %v240 = vsub.f32 %v199, %v236
        %v241 = vsub.f32 %v200, %v232
        %v242 = vsub.f32 %v200, %v236
        %v243 = vand.u32 2147483647, %v239
        %v244 = vand.u32 2147483647, %v240
        %v245 = vand.u32 2147483647, %v241
        %v246 = vand.u32 2147483647, %v242
        %v247 = vsub.f32 1.0, %v243
        %v248 = vsub.f32 1.0, %v244
        %v249 = vsub.f32 1.0, %v245
        %v250 = vsub.f32 1.0, %v246
        %v251 = vmax.f32 %v247, 0.0
        %v252 = vmax.f32 %v248, 0.0
        %v253 = vmax.f32 %v249, 0.0
        %v254 = vmax.f32 %v250, 0.0
        %v255 = vld [vmem:[%s191] sm:$0xff]
        %v256 = vld [vmem:[%s191 + $0x8] sm:$0xff]
        %v257 = vld [vmem:[%s191 + $0x10] sm:$0xff]
        %v258 = vld [vmem:[%s191 + $0x18] sm:$0xff]
        %v259 = vld [vmem:[%s191 + $0x20] sm:$0xff]
        %v260 = vld [vmem:[%s191 + $0x28] sm:$0xff]
        %v261 = vld [vmem:[%s191 + $0x30] sm:$0xff]
        %v262 = vld [vmem:[%s191 + $0x38] sm:$0xff]
        %vm263 = vcmask 130048
        %v265 = vsel %vm263, %v255, 0
        %v268 = vsel %vm263, %v256, 0
        %v271 = vsel %vm263, %v257, 0
        %v274 = vsel %vm263, %v258, 0
        %v277 = vsel %vm263, %v259, 0
        %v280 = vsel %vm263, %v260, 0
        %v283 = vsel %vm263, %v261, 0
        %v286 = vsel %vm263, %v262, 0
        %288 = vmatprep.subr.mxu0 0.0
        %289 = vmatpush1.msra.mxu0 0.0
        %290 = vmatprep.subr.mxu0 0.0
        %291 = vmatpush1.msra.mxu0 0.0
        %292 = vmatprep.subr.mxu0 0.0
        %293 = vmatpush1.msra.mxu0 0.0
        %294 = vmatprep.subr.mxu0 0.0
        %295 = vmatpush1.msra.mxu0 0.0
        %296 = vmatprep.subr.mxu0 0.0
        %297 = vmatpush1.msra.mxu0 0.0
        %298 = vmatprep.subr.mxu0 0.0
        %299 = vmatpush1.msra.mxu0 0.0
        %300 = vmatprep.subr.mxu0 0.0
        %301 = vmatpush1.msra.mxu0 0.0
        %302 = vmatprep.subr.mxu0 0.0
        %303 = vmatpush1.msra.mxu0 0.0
        %304 = vmatprep.subr.mxu0 0.0
        %305 = vmatpush1.msra.mxu0 0.0
        %306 = vmatprep.subr.mxu0 0.0
        %307 = vmatpush1.msra.mxu0 0.0
        %308 = vmatprep.subr.mxu0 0.0
        %309 = vmatpush1.msra.mxu0 0.0
        %310 = vmatprep.subr.mxu0 0.0
        %311 = vmatpush1.msra.mxu0 0.0
        %312 = vmatprep.subr.mxu0 0.0
        %313 = vmatpush1.msra.mxu0 0.0
        %314 = vmatprep.subr.mxu0 0.0
        %315 = vmatpush1.msra.mxu0 0.0
        %v316 = vand.u32 %v227, 4294901760
        %317 = vmatprep.subr.mxu0 %v316
        %v318 = vand.u32 %v226, 4294901760
        %319 = vmatpush1.msra.mxu0 %v318
        %v320 = vand.u32 %v225, 4294901760
        %321 = vmatprep.subr.mxu0 %v320
        %v322 = vand.u32 %v224, 4294901760
        %323 = vmatpush1.msra.mxu0 %v322
        %324 = vmatprep.subr.mxu0 0.0
        %325 = vmatpush2.msra.mxu0 0.0
        %326 = vmatprep.subr.mxu0 0.0
        %327 = vmatpush2.msra.mxu0 0.0
        %328 = vmatprep.subr.mxu0 0.0
        %329 = vmatpush2.msra.mxu0 0.0
        %330 = vmatprep.subr.mxu0 0.0
        %331 = vmatpush2.msra.mxu0 0.0
        %332 = vmatprep.subr.mxu0 0.0
        %333 = vmatpush2.msra.mxu0 0.0
        %334 = vmatprep.subr.mxu0 0.0
        %335 = vmatpush2.msra.mxu0 0.0
        %336 = vmatprep.subr.mxu0 0.0
        %337 = vmatpush2.msra.mxu0 0.0
        %338 = vmatprep.subr.mxu0 0.0
        %339 = vmatpush2.msra.mxu0 0.0
        %340 = vmatprep.subr.mxu0 0.0
        %341 = vmatpush2.msra.mxu0 0.0
        %342 = vmatprep.subr.mxu0 0.0
        %343 = vmatpush2.msra.mxu0 0.0
        %344 = vmatprep.subr.mxu0 0.0
        %345 = vmatpush2.msra.mxu0 0.0
        %346 = vmatprep.subr.mxu0 0.0
        %347 = vmatpush2.msra.mxu0 0.0
        %348 = vmatprep.subr.mxu0 0.0
        %349 = vmatpush2.msra.mxu0 0.0
        %350 = vmatprep.subr.mxu0 0.0
        %351 = vmatpush2.msra.mxu0 0.0
        %352 = vmatprep.subr.mxu0 0.0
        %353 = vmatpush2.msra.mxu0 0.0
        %354 = vmatprep.subr.mxu0 0.0
        %355 = vmatpush2.msra.mxu0 0.0
        %356 = vmatprep.mubr.f32.mxu0 0.0
        %v357 = vand.u32 %v265, 4294901760
        %v358 = vsub.f32 %v265, %v357
        %v359 = vand.u32 %v358, 4294901760
        %v360 = vsub.f32 %v358, %v359
        %v361 = vand.u32 %v360, 4294901760
        %362 = vmatmul.mubr.f32.gmra.mxu0 %v361
        %v363 = vpop.f32.mrf.mxu0
        %v364 = vadd.f32 0.0, %v363
        %v365 = vpop.f32.mrf.mxu0
        %v366 = vadd.f32 0.0, %v365
        %367 = vmatprep.mubr.f32.mxu0 0.0
        %v368 = vand.u32 %v268, 4294901760
        %v369 = vsub.f32 %v268, %v368
        %v370 = vand.u32 %v369, 4294901760
        %v371 = vsub.f32 %v369, %v370
        %v372 = vand.u32 %v371, 4294901760
        %373 = vmatmul.mubr.f32.gmra.mxu0 %v372
        %v374 = vpop.f32.mrf.mxu0
        %v375 = vadd.f32 0.0, %v374
        %v376 = vpop.f32.mrf.mxu0
        %v377 = vadd.f32 0.0, %v376
        %378 = vmatprep.mubr.f32.mxu0 0.0
        %v379 = vand.u32 %v271, 4294901760
        %v380 = vsub.f32 %v271, %v379
        %v381 = vand.u32 %v380, 4294901760
        %v382 = vsub.f32 %v380, %v381
        %v383 = vand.u32 %v382, 4294901760
        %384 = vmatmul.mubr.f32.gmra.mxu0 %v383
        %v385 = vpop.f32.mrf.mxu0
        %v386 = vadd.f32 0.0, %v385
        %v387 = vpop.f32.mrf.mxu0
        %v388 = vadd.f32 0.0, %v387
        %389 = vmatprep.mubr.f32.mxu0 0.0
        %v390 = vand.u32 %v274, 4294901760
        %v391 = vsub.f32 %v274, %v390
        %v392 = vand.u32 %v391, 4294901760
        %v393 = vsub.f32 %v391, %v392
        %v394 = vand.u32 %v393, 4294901760
        %395 = vmatmul.mubr.f32.gmra.mxu0 %v394
        %v396 = vpop.f32.mrf.mxu0
        %v397 = vadd.f32 0.0, %v396
        %v398 = vpop.f32.mrf.mxu0
        %v399 = vadd.f32 0.0, %v398
        %400 = vmatprep.mubr.f32.mxu0 0.0
        %v401 = vand.u32 %v277, 4294901760
        %v402 = vsub.f32 %v277, %v401
        %v403 = vand.u32 %v402, 4294901760
        %v404 = vsub.f32 %v402, %v403
        %v405 = vand.u32 %v404, 4294901760
        %406 = vmatmul.mubr.f32.gmra.mxu0 %v405
        %v407 = vpop.f32.mrf.mxu0
        %v408 = vadd.f32 0.0, %v407
        %v409 = vpop.f32.mrf.mxu0
        %v410 = vadd.f32 0.0, %v409
        %411 = vmatprep.mubr.f32.mxu0 0.0
        %v412 = vand.u32 %v280, 4294901760
        %v413 = vsub.f32 %v280, %v412
        %v414 = vand.u32 %v413, 4294901760
        %v415 = vsub.f32 %v413, %v414
        %v416 = vand.u32 %v415, 4294901760
        %417 = vmatmul.mubr.f32.gmra.mxu0 %v416
        %v418 = vpop.f32.mrf.mxu0
        %v419 = vadd.f32 0.0, %v418
        %v420 = vpop.f32.mrf.mxu0
        %v421 = vadd.f32 0.0, %v420
        %422 = vmatprep.mubr.f32.mxu0 0.0
        %v423 = vand.u32 %v283, 4294901760
        %v424 = vsub.f32 %v283, %v423
        %v425 = vand.u32 %v424, 4294901760
        %v426 = vsub.f32 %v424, %v425
        %v427 = vand.u32 %v426, 4294901760
        %428 = vmatmul.mubr.f32.gmra.mxu0 %v427
        %v429 = vpop.f32.mrf.mxu0
        %v430 = vadd.f32 0.0, %v429
        %v431 = vpop.f32.mrf.mxu0
        %v432 = vadd.f32 0.0, %v431
        %433 = vmatprep.mubr.f32.mxu0 0.0
        %v434 = vand.u32 %v286, 4294901760
        %v435 = vsub.f32 %v286, %v434
        %v436 = vand.u32 %v435, 4294901760
        %v437 = vsub.f32 %v435, %v436
        %v438 = vand.u32 %v437, 4294901760
        %439 = vmatmul.mubr.f32.gmra.mxu0 %v438
        %v440 = vpop.f32.mrf.mxu0
        %v441 = vadd.f32 0.0, %v440
        %v442 = vpop.f32.mrf.mxu0
        %v443 = vadd.f32 0.0, %v442
        %444 = vdwg.mxu0
        %445 = vmatprep.subr.mxu0 0.0
        %446 = vmatpush1.msra.mxu0 0.0
        %447 = vmatprep.subr.mxu0 0.0
        %448 = vmatpush1.msra.mxu0 0.0
        %449 = vmatprep.subr.mxu0 0.0
        %450 = vmatpush1.msra.mxu0 0.0
        %451 = vmatprep.subr.mxu0 0.0
        %452 = vmatpush1.msra.mxu0 0.0
        %453 = vmatprep.subr.mxu0 0.0
        %454 = vmatpush1.msra.mxu0 0.0
        %455 = vmatprep.subr.mxu0 0.0
        %456 = vmatpush1.msra.mxu0 0.0
        %457 = vmatprep.subr.mxu0 0.0
        %458 = vmatpush1.msra.mxu0 0.0
        %459 = vmatprep.subr.mxu0 0.0
        %460 = vmatpush1.msra.mxu0 0.0
        %461 = vmatprep.subr.mxu0 0.0
        %462 = vmatpush1.msra.mxu0 0.0
        %463 = vmatprep.subr.mxu0 0.0
        %464 = vmatpush1.msra.mxu0 0.0
        %465 = vmatprep.subr.mxu0 0.0
        %466 = vmatpush1.msra.mxu0 0.0
        %467 = vmatprep.subr.mxu0 0.0
        %468 = vmatpush1.msra.mxu0 0.0
        %469 = vmatprep.subr.mxu0 0.0
        %470 = vmatpush1.msra.mxu0 0.0
        %471 = vmatprep.subr.mxu0 0.0
        %472 = vmatpush1.msra.mxu0 0.0
        %v473 = vand.u32 %v227, 4294901760
        %v474 = vsub.f32 %v227, %v473
        %v475 = vand.u32 %v474, 4294901760
        %v476 = vsub.f32 %v474, %v475
        %v477 = vand.u32 %v476, 4294901760
        %478 = vmatprep.subr.mxu0 %v477
        %v479 = vand.u32 %v226, 4294901760
        %v480 = vsub.f32 %v226, %v479
        %v481 = vand.u32 %v480, 4294901760
        %v482 = vsub.f32 %v480, %v481
        %v483 = vand.u32 %v482, 4294901760
        %484 = vmatpush1.msra.mxu0 %v483
        %v485 = vand.u32 %v225, 4294901760
        %v486 = vsub.f32 %v225, %v485
        %v487 = vand.u32 %v486, 4294901760
        %v488 = vsub.f32 %v486, %v487
        %v489 = vand.u32 %v488, 4294901760
        %490 = vmatprep.subr.mxu0 %v489
        %v491 = vand.u32 %v224, 4294901760
        %v492 = vsub.f32 %v224, %v491
        %v493 = vand.u32 %v492, 4294901760
        %v494 = vsub.f32 %v492, %v493
        %v495 = vand.u32 %v494, 4294901760
        %496 = vmatpush1.msra.mxu0 %v495
        %497 = vmatprep.subr.mxu0 0.0
        %498 = vmatpush2.msra.mxu0 0.0
        %499 = vmatprep.subr.mxu0 0.0
        %500 = vmatpush2.msra.mxu0 0.0
        %501 = vmatprep.subr.mxu0 0.0
        %502 = vmatpush2.msra.mxu0 0.0
        %503 = vmatprep.subr.mxu0 0.0
        %504 = vmatpush2.msra.mxu0 0.0
        %505 = vmatprep.subr.mxu0 0.0
        %506 = vmatpush2.msra.mxu0 0.0
        %507 = vmatprep.subr.mxu0 0.0
        %508 = vmatpush2.msra.mxu0 0.0
        %509 = vmatprep.subr.mxu0 0.0
        %510 = vmatpush2.msra.mxu0 0.0
        %511 = vmatprep.subr.mxu0 0.0
        %512 = vmatpush2.msra.mxu0 0.0
        %513 = vmatprep.subr.mxu0 0.0
        %514 = vmatpush2.msra.mxu0 0.0
        %515 = vmatprep.subr.mxu0 0.0
        %516 = vmatpush2.msra.mxu0 0.0
        %517 = vmatprep.subr.mxu0 0.0
        %518 = vmatpush2.msra.mxu0 0.0
        %519 = vmatprep.subr.mxu0 0.0
        %520 = vmatpush2.msra.mxu0 0.0
        %521 = vmatprep.subr.mxu0 0.0
        %522 = vmatpush2.msra.mxu0 0.0
        %523 = vmatprep.subr.mxu0 0.0
        %524 = vmatpush2.msra.mxu0 0.0
        %525 = vmatprep.subr.mxu0 0.0
        %526 = vmatpush2.msra.mxu0 0.0
        %527 = vmatprep.subr.mxu0 0.0
        %528 = vmatpush2.msra.mxu0 0.0
        %529 = vmatprep.mubr.f32.mxu0 0.0
        %v530 = vand.u32 %v265, 4294901760
        %531 = vmatmul.mubr.f32.gmra.mxu0 %v530
        %v532 = vpop.f32.mrf.mxu0
        %v533 = vadd.f32 %v364, %v532
        %v534 = vpop.f32.mrf.mxu0
        %v535 = vadd.f32 %v366, %v534
        %536 = vmatprep.mubr.f32.mxu0 0.0
        %v537 = vand.u32 %v268, 4294901760
        %538 = vmatmul.mubr.f32.gmra.mxu0 %v537
        %v539 = vpop.f32.mrf.mxu0
        %v540 = vadd.f32 %v375, %v539
        %v541 = vpop.f32.mrf.mxu0
        %v542 = vadd.f32 %v377, %v541
        %543 = vmatprep.mubr.f32.mxu0 0.0
        %v544 = vand.u32 %v271, 4294901760
        %545 = vmatmul.mubr.f32.gmra.mxu0 %v544
        %v546 = vpop.f32.mrf.mxu0
        %v547 = vadd.f32 %v386, %v546
        %v548 = vpop.f32.mrf.mxu0
        %v549 = vadd.f32 %v388, %v548
        %550 = vmatprep.mubr.f32.mxu0 0.0
        %v551 = vand.u32 %v274, 4294901760
        %552 = vmatmul.mubr.f32.gmra.mxu0 %v551
        %v553 = vpop.f32.mrf.mxu0
        %v554 = vadd.f32 %v397, %v553
        %v555 = vpop.f32.mrf.mxu0
        %v556 = vadd.f32 %v399, %v555
        %557 = vmatprep.mubr.f32.mxu0 0.0
        %v558 = vand.u32 %v277, 4294901760
        %559 = vmatmul.mubr.f32.gmra.mxu0 %v558
        %v560 = vpop.f32.mrf.mxu0
        %v561 = vadd.f32 %v408, %v560
        %v562 = vpop.f32.mrf.mxu0
        %v563 = vadd.f32 %v410, %v562
        %564 = vmatprep.mubr.f32.mxu0 0.0
        %v565 = vand.u32 %v280, 4294901760
        %566 = vmatmul.mubr.f32.gmra.mxu0 %v565
        %v567 = vpop.f32.mrf.mxu0
        %v568 = vadd.f32 %v419, %v567
        %v569 = vpop.f32.mrf.mxu0
        %v570 = vadd.f32 %v421, %v569
        %571 = vmatprep.mubr.f32.mxu0 0.0
        %v572 = vand.u32 %v283, 4294901760
        %573 = vmatmul.mubr.f32.gmra.mxu0 %v572
        %v574 = vpop.f32.mrf.mxu0
        %v575 = vadd.f32 %v430, %v574
        %v576 = vpop.f32.mrf.mxu0
        %v577 = vadd.f32 %v432, %v576
        %578 = vmatprep.mubr.f32.mxu0 0.0
        %v579 = vand.u32 %v286, 4294901760
        %580 = vmatmul.mubr.f32.gmra.mxu0 %v579
        %v581 = vpop.f32.mrf.mxu0
        %v582 = vadd.f32 %v441, %v581
        %v583 = vpop.f32.mrf.mxu0
        %v584 = vadd.f32 %v443, %v583
        %585 = vdwg.mxu0
        %586 = vmatprep.subr.mxu0 0.0
        %587 = vmatpush1.msra.mxu0 0.0
        %588 = vmatprep.subr.mxu0 0.0
        %589 = vmatpush1.msra.mxu0 0.0
        %590 = vmatprep.subr.mxu0 0.0
        %591 = vmatpush1.msra.mxu0 0.0
        %592 = vmatprep.subr.mxu0 0.0
        %593 = vmatpush1.msra.mxu0 0.0
        %594 = vmatprep.subr.mxu0 0.0
        %595 = vmatpush1.msra.mxu0 0.0
        %596 = vmatprep.subr.mxu0 0.0
        %597 = vmatpush1.msra.mxu0 0.0
        %598 = vmatprep.subr.mxu0 0.0
        %599 = vmatpush1.msra.mxu0 0.0
        %600 = vmatprep.subr.mxu0 0.0
        %601 = vmatpush1.msra.mxu0 0.0
        %602 = vmatprep.subr.mxu0 0.0
        %603 = vmatpush1.msra.mxu0 0.0
        %604 = vmatprep.subr.mxu0 0.0
        %605 = vmatpush1.msra.mxu0 0.0
        %606 = vmatprep.subr.mxu0 0.0
        %607 = vmatpush1.msra.mxu0 0.0
        %608 = vmatprep.subr.mxu0 0.0
        %609 = vmatpush1.msra.mxu0 0.0
        %610 = vmatprep.subr.mxu0 0.0
        %611 = vmatpush1.msra.mxu0 0.0
        %612 = vmatprep.subr.mxu0 0.0
        %613 = vmatpush1.msra.mxu0 0.0
        %v614 = vand.u32 %v227, 4294901760
        %v615 = vsub.f32 %v227, %v614
        %616 = vmatprep.subr.mxu0 %v615
        %v617 = vand.u32 %v226, 4294901760
        %v618 = vsub.f32 %v226, %v617
        %619 = vmatpush1.msra.mxu0 %v618
        %v620 = vand.u32 %v225, 4294901760
        %v621 = vsub.f32 %v225, %v620
        %622 = vmatprep.subr.mxu0 %v621
        %v623 = vand.u32 %v224, 4294901760
        %v624 = vsub.f32 %v224, %v623
        %625 = vmatpush1.msra.mxu0 %v624
        %626 = vmatprep.subr.mxu0 0.0
        %627 = vmatpush2.msra.mxu0 0.0
        %628 = vmatprep.subr.mxu0 0.0
        %629 = vmatpush2.msra.mxu0 0.0
        %630 = vmatprep.subr.mxu0 0.0
        %631 = vmatpush2.msra.mxu0 0.0
        %632 = vmatprep.subr.mxu0 0.0
        %633 = vmatpush2.msra.mxu0 0.0
        %634 = vmatprep.subr.mxu0 0.0
        %635 = vmatpush2.msra.mxu0 0.0
        %636 = vmatprep.subr.mxu0 0.0
        %637 = vmatpush2.msra.mxu0 0.0
        %638 = vmatprep.subr.mxu0 0.0
        %639 = vmatpush2.msra.mxu0 0.0
        %640 = vmatprep.subr.mxu0 0.0
        %641 = vmatpush2.msra.mxu0 0.0
        %642 = vmatprep.subr.mxu0 0.0
        %643 = vmatpush2.msra.mxu0 0.0
        %644 = vmatprep.subr.mxu0 0.0
        %645 = vmatpush2.msra.mxu0 0.0
        %646 = vmatprep.subr.mxu0 0.0
        %647 = vmatpush2.msra.mxu0 0.0
        %648 = vmatprep.subr.mxu0 0.0
        %649 = vmatpush2.msra.mxu0 0.0
        %650 = vmatprep.subr.mxu0 0.0
        %651 = vmatpush2.msra.mxu0 0.0
        %652 = vmatprep.subr.mxu0 0.0
        %653 = vmatpush2.msra.mxu0 0.0
        %654 = vmatprep.subr.mxu0 0.0
        %655 = vmatpush2.msra.mxu0 0.0
        %656 = vmatprep.subr.mxu0 0.0
        %657 = vmatpush2.msra.mxu0 0.0
        %658 = vmatprep.mubr.f32.mxu0 0.0
        %v659 = vand.u32 %v265, 4294901760
        %v660 = vsub.f32 %v265, %v659
        %661 = vmatmul.mubr.f32.gmra.mxu0 %v660
        %v662 = vpop.f32.mrf.mxu0
        %v663 = vadd.f32 %v533, %v662
        %v664 = vpop.f32.mrf.mxu0
        %v665 = vadd.f32 %v535, %v664
        %666 = vmatprep.mubr.f32.mxu0 0.0
        %v667 = vand.u32 %v268, 4294901760
        %v668 = vsub.f32 %v268, %v667
        %669 = vmatmul.mubr.f32.gmra.mxu0 %v668
        %v670 = vpop.f32.mrf.mxu0
        %v671 = vadd.f32 %v540, %v670
        %v672 = vpop.f32.mrf.mxu0
        %v673 = vadd.f32 %v542, %v672
        %674 = vmatprep.mubr.f32.mxu0 0.0
        %v675 = vand.u32 %v271, 4294901760
        %v676 = vsub.f32 %v271, %v675
        %677 = vmatmul.mubr.f32.gmra.mxu0 %v676
        %v678 = vpop.f32.mrf.mxu0
        %v679 = vadd.f32 %v547, %v678
        %v680 = vpop.f32.mrf.mxu0
        %v681 = vadd.f32 %v549, %v680
        %682 = vmatprep.mubr.f32.mxu0 0.0
        %v683 = vand.u32 %v274, 4294901760
        %v684 = vsub.f32 %v274, %v683
        %685 = vmatmul.mubr.f32.gmra.mxu0 %v684
        %v686 = vpop.f32.mrf.mxu0
        %v687 = vadd.f32 %v554, %v686
        %v688 = vpop.f32.mrf.mxu0
        %v689 = vadd.f32 %v556, %v688
        %690 = vmatprep.mubr.f32.mxu0 0.0
        %v691 = vand.u32 %v277, 4294901760
        %v692 = vsub.f32 %v277, %v691
        %693 = vmatmul.mubr.f32.gmra.mxu0 %v692
        %v694 = vpop.f32.mrf.mxu0
        %v695 = vadd.f32 %v561, %v694
        %v696 = vpop.f32.mrf.mxu0
        %v697 = vadd.f32 %v563, %v696
        %698 = vmatprep.mubr.f32.mxu0 0.0
        %v699 = vand.u32 %v280, 4294901760
        %v700 = vsub.f32 %v280, %v699
        %701 = vmatmul.mubr.f32.gmra.mxu0 %v700
        %v702 = vpop.f32.mrf.mxu0
        %v703 = vadd.f32 %v568, %v702
        %v704 = vpop.f32.mrf.mxu0
        %v705 = vadd.f32 %v570, %v704
        %706 = vmatprep.mubr.f32.mxu0 0.0
        %v707 = vand.u32 %v283, 4294901760
        %v708 = vsub.f32 %v283, %v707
        %709 = vmatmul.mubr.f32.gmra.mxu0 %v708
        %v710 = vpop.f32.mrf.mxu0
        %v711 = vadd.f32 %v575, %v710
        %v712 = vpop.f32.mrf.mxu0
        %v713 = vadd.f32 %v577, %v712
        %714 = vmatprep.mubr.f32.mxu0 0.0
        %v715 = vand.u32 %v286, 4294901760
        %v716 = vsub.f32 %v286, %v715
        %717 = vmatmul.mubr.f32.gmra.mxu0 %v716
        %v718 = vpop.f32.mrf.mxu0
        %v719 = vadd.f32 %v582, %v718
        %v720 = vpop.f32.mrf.mxu0
        %v721 = vadd.f32 %v584, %v720
        %722 = vdwg.mxu0
        %723 = vmatprep.subr.mxu0 0.0
        %724 = vmatpush1.msra.mxu0 0.0
        %725 = vmatprep.subr.mxu0 0.0
        %726 = vmatpush1.msra.mxu0 0.0
        %727 = vmatprep.subr.mxu0 0.0
        %728 = vmatpush1.msra.mxu0 0.0
        %729 = vmatprep.subr.mxu0 0.0
        %730 = vmatpush1.msra.mxu0 0.0
        %731 = vmatprep.subr.mxu0 0.0
        %732 = vmatpush1.msra.mxu0 0.0
        %733 = vmatprep.subr.mxu0 0.0
        %734 = vmatpush1.msra.mxu0 0.0
        %735 = vmatprep.subr.mxu0 0.0
        %736 = vmatpush1.msra.mxu0 0.0
        %737 = vmatprep.subr.mxu0 0.0
        %738 = vmatpush1.msra.mxu0 0.0
        %739 = vmatprep.subr.mxu0 0.0
        %740 = vmatpush1.msra.mxu0 0.0
        %741 = vmatprep.subr.mxu0 0.0
        %742 = vmatpush1.msra.mxu0 0.0
        %743 = vmatprep.subr.mxu0 0.0
        %744 = vmatpush1.msra.mxu0 0.0
        %745 = vmatprep.subr.mxu0 0.0
        %746 = vmatpush1.msra.mxu0 0.0
        %747 = vmatprep.subr.mxu0 0.0
        %748 = vmatpush1.msra.mxu0 0.0
        %749 = vmatprep.subr.mxu0 0.0
        %750 = vmatpush1.msra.mxu0 0.0
        %v751 = vand.u32 %v227, 4294901760
        %752 = vmatprep.subr.mxu0 %v751
        %v753 = vand.u32 %v226, 4294901760
        %754 = vmatpush1.msra.mxu0 %v753
        %v755 = vand.u32 %v225, 4294901760
        %756 = vmatprep.subr.mxu0 %v755
        %v757 = vand.u32 %v224, 4294901760
        %758 = vmatpush1.msra.mxu0 %v757
        %759 = vmatprep.subr.mxu0 0.0
        %760 = vmatpush2.msra.mxu0 0.0
        %761 = vmatprep.subr.mxu0 0.0
        %762 = vmatpush2.msra.mxu0 0.0
        %763 = vmatprep.subr.mxu0 0.0
        %764 = vmatpush2.msra.mxu0 0.0
        %765 = vmatprep.subr.mxu0 0.0
        %766 = vmatpush2.msra.mxu0 0.0
        %767 = vmatprep.subr.mxu0 0.0
        %768 = vmatpush2.msra.mxu0 0.0
        %769 = vmatprep.subr.mxu0 0.0
        %770 = vmatpush2.msra.mxu0 0.0
        %771 = vmatprep.subr.mxu0 0.0
        %772 = vmatpush2.msra.mxu0 0.0
        %773 = vmatprep.subr.mxu0 0.0
        %774 = vmatpush2.msra.mxu0 0.0
        %775 = vmatprep.subr.mxu0 0.0
        %776 = vmatpush2.msra.mxu0 0.0
        %777 = vmatprep.subr.mxu0 0.0
        %778 = vmatpush2.msra.mxu0 0.0
        %779 = vmatprep.subr.mxu0 0.0
        %780 = vmatpush2.msra.mxu0 0.0
        %781 = vmatprep.subr.mxu0 0.0
        %782 = vmatpush2.msra.mxu0 0.0
        %783 = vmatprep.subr.mxu0 0.0
        %784 = vmatpush2.msra.mxu0 0.0
        %785 = vmatprep.subr.mxu0 0.0
        %786 = vmatpush2.msra.mxu0 0.0
        %787 = vmatprep.subr.mxu0 0.0
        %788 = vmatpush2.msra.mxu0 0.0
        %789 = vmatprep.subr.mxu0 0.0
        %790 = vmatpush2.msra.mxu0 0.0
        %791 = vmatprep.mubr.f32.mxu0 0.0
        %v792 = vand.u32 %v265, 4294901760
        %v793 = vsub.f32 %v265, %v792
        %v794 = vand.u32 %v793, 4294901760
        %795 = vmatmul.mubr.f32.gmra.mxu0 %v794
        %v796 = vpop.f32.mrf.mxu0
        %v797 = vadd.f32 %v663, %v796
        %v798 = vpop.f32.mrf.mxu0
        %v799 = vadd.f32 %v665, %v798
        %800 = vmatprep.mubr.f32.mxu0 0.0
        %v801 = vand.u32 %v268, 4294901760
        %v802 = vsub.f32 %v268, %v801
        %v803 = vand.u32 %v802, 4294901760
        %804 = vmatmul.mubr.f32.gmra.mxu0 %v803
        %v805 = vpop.f32.mrf.mxu0
        %v806 = vadd.f32 %v671, %v805
        %v807 = vpop.f32.mrf.mxu0
        %v808 = vadd.f32 %v673, %v807
        %809 = vmatprep.mubr.f32.mxu0 0.0
        %v810 = vand.u32 %v271, 4294901760
        %v811 = vsub.f32 %v271, %v810
        %v812 = vand.u32 %v811, 4294901760
        %813 = vmatmul.mubr.f32.gmra.mxu0 %v812
        %v814 = vpop.f32.mrf.mxu0
        %v815 = vadd.f32 %v679, %v814
        %v816 = vpop.f32.mrf.mxu0
        %v817 = vadd.f32 %v681, %v816
        %818 = vmatprep.mubr.f32.mxu0 0.0
        %v819 = vand.u32 %v274, 4294901760
        %v820 = vsub.f32 %v274, %v819
        %v821 = vand.u32 %v820, 4294901760
        %822 = vmatmul.mubr.f32.gmra.mxu0 %v821
        %v823 = vpop.f32.mrf.mxu0
        %v824 = vadd.f32 %v687, %v823
        %v825 = vpop.f32.mrf.mxu0
        %v826 = vadd.f32 %v689, %v825
        %827 = vmatprep.mubr.f32.mxu0 0.0
        %v828 = vand.u32 %v277, 4294901760
        %v829 = vsub.f32 %v277, %v828
        %v830 = vand.u32 %v829, 4294901760
        %831 = vmatmul.mubr.f32.gmra.mxu0 %v830
        %v832 = vpop.f32.mrf.mxu0
        %v833 = vadd.f32 %v695, %v832
        %v834 = vpop.f32.mrf.mxu0
        %v835 = vadd.f32 %v697, %v834
        %836 = vmatprep.mubr.f32.mxu0 0.0
        %v837 = vand.u32 %v280, 4294901760
        %v838 = vsub.f32 %v280, %v837
        %v839 = vand.u32 %v838, 4294901760
        %840 = vmatmul.mubr.f32.gmra.mxu0 %v839
        %v841 = vpop.f32.mrf.mxu0
        %v842 = vadd.f32 %v703, %v841
        %v843 = vpop.f32.mrf.mxu0
        %v844 = vadd.f32 %v705, %v843
        %845 = vmatprep.mubr.f32.mxu0 0.0
        %v846 = vand.u32 %v283, 4294901760
        %v847 = vsub.f32 %v283, %v846
        %v848 = vand.u32 %v847, 4294901760
        %849 = vmatmul.mubr.f32.gmra.mxu0 %v848
        %v850 = vpop.f32.mrf.mxu0
        %v851 = vadd.f32 %v711, %v850
        %v852 = vpop.f32.mrf.mxu0
        %v853 = vadd.f32 %v713, %v852
        %854 = vmatprep.mubr.f32.mxu0 0.0
        %v855 = vand.u32 %v286, 4294901760
        %v856 = vsub.f32 %v286, %v855
        %v857 = vand.u32 %v856, 4294901760
        %858 = vmatmul.mubr.f32.gmra.mxu0 %v857
        %v859 = vpop.f32.mrf.mxu0
        %v860 = vadd.f32 %v719, %v859
        %v861 = vpop.f32.mrf.mxu0
        %v862 = vadd.f32 %v721, %v861
        %863 = vdwg.mxu0
        %864 = vmatprep.subr.mxu0 0.0
        %865 = vmatpush1.msra.mxu0 0.0
        %866 = vmatprep.subr.mxu0 0.0
        %867 = vmatpush1.msra.mxu0 0.0
        %868 = vmatprep.subr.mxu0 0.0
        %869 = vmatpush1.msra.mxu0 0.0
        %870 = vmatprep.subr.mxu0 0.0
        %871 = vmatpush1.msra.mxu0 0.0
        %872 = vmatprep.subr.mxu0 0.0
        %873 = vmatpush1.msra.mxu0 0.0
        %874 = vmatprep.subr.mxu0 0.0
        %875 = vmatpush1.msra.mxu0 0.0
        %876 = vmatprep.subr.mxu0 0.0
        %877 = vmatpush1.msra.mxu0 0.0
        %878 = vmatprep.subr.mxu0 0.0
        %879 = vmatpush1.msra.mxu0 0.0
        %880 = vmatprep.subr.mxu0 0.0
        %881 = vmatpush1.msra.mxu0 0.0
        %882 = vmatprep.subr.mxu0 0.0
        %883 = vmatpush1.msra.mxu0 0.0
        %884 = vmatprep.subr.mxu0 0.0
        %885 = vmatpush1.msra.mxu0 0.0
        %886 = vmatprep.subr.mxu0 0.0
        %887 = vmatpush1.msra.mxu0 0.0
        %888 = vmatprep.subr.mxu0 0.0
        %889 = vmatpush1.msra.mxu0 0.0
        %890 = vmatprep.subr.mxu0 0.0
        %891 = vmatpush1.msra.mxu0 0.0
        %v892 = vand.u32 %v227, 4294901760
        %v893 = vsub.f32 %v227, %v892
        %v894 = vand.u32 %v893, 4294901760
        %895 = vmatprep.subr.mxu0 %v894
        %v896 = vand.u32 %v226, 4294901760
        %v897 = vsub.f32 %v226, %v896
        %v898 = vand.u32 %v897, 4294901760
        %899 = vmatpush1.msra.mxu0 %v898
        %v900 = vand.u32 %v225, 4294901760
        %v901 = vsub.f32 %v225, %v900
        %v902 = vand.u32 %v901, 4294901760
        %903 = vmatprep.subr.mxu0 %v902
        %v904 = vand.u32 %v224, 4294901760
        %v905 = vsub.f32 %v224, %v904
        %v906 = vand.u32 %v905, 4294901760
        %907 = vmatpush1.msra.mxu0 %v906
        %908 = vmatprep.subr.mxu0 0.0
        %909 = vmatpush2.msra.mxu0 0.0
        %910 = vmatprep.subr.mxu0 0.0
        %911 = vmatpush2.msra.mxu0 0.0
        %912 = vmatprep.subr.mxu0 0.0
        %913 = vmatpush2.msra.mxu0 0.0
        %914 = vmatprep.subr.mxu0 0.0
        %915 = vmatpush2.msra.mxu0 0.0
        %916 = vmatprep.subr.mxu0 0.0
        %917 = vmatpush2.msra.mxu0 0.0
        %918 = vmatprep.subr.mxu0 0.0
        %919 = vmatpush2.msra.mxu0 0.0
        %920 = vmatprep.subr.mxu0 0.0
        %921 = vmatpush2.msra.mxu0 0.0
        %922 = vmatprep.subr.mxu0 0.0
        %923 = vmatpush2.msra.mxu0 0.0
        %924 = vmatprep.subr.mxu0 0.0
        %925 = vmatpush2.msra.mxu0 0.0
        %926 = vmatprep.subr.mxu0 0.0
        %927 = vmatpush2.msra.mxu0 0.0
        %928 = vmatprep.subr.mxu0 0.0
        %929 = vmatpush2.msra.mxu0 0.0
        %930 = vmatprep.subr.mxu0 0.0
        %931 = vmatpush2.msra.mxu0 0.0
        %932 = vmatprep.subr.mxu0 0.0
        %933 = vmatpush2.msra.mxu0 0.0
        %934 = vmatprep.subr.mxu0 0.0
        %935 = vmatpush2.msra.mxu0 0.0
        %936 = vmatprep.subr.mxu0 0.0
        %937 = vmatpush2.msra.mxu0 0.0
        %938 = vmatprep.subr.mxu0 0.0
        %939 = vmatpush2.msra.mxu0 0.0
        %940 = vmatprep.mubr.f32.mxu0 0.0
        %v941 = vand.u32 %v265, 4294901760
        %942 = vmatmul.mubr.f32.gmra.mxu0 %v941
        %v943 = vpop.f32.mrf.mxu0
        %v944 = vadd.f32 %v797, %v943
        %v945 = vpop.f32.mrf.mxu0
        %v946 = vadd.f32 %v799, %v945
        %947 = vmatprep.mubr.f32.mxu0 0.0
        %v948 = vand.u32 %v268, 4294901760
        %949 = vmatmul.mubr.f32.gmra.mxu0 %v948
        %v950 = vpop.f32.mrf.mxu0
        %v951 = vadd.f32 %v806, %v950
        %v952 = vpop.f32.mrf.mxu0
        %v953 = vadd.f32 %v808, %v952
        %954 = vmatprep.mubr.f32.mxu0 0.0
        %v955 = vand.u32 %v271, 4294901760
        %956 = vmatmul.mubr.f32.gmra.mxu0 %v955
        %v957 = vpop.f32.mrf.mxu0
        %v958 = vadd.f32 %v815, %v957
        %v959 = vpop.f32.mrf.mxu0
        %v960 = vadd.f32 %v817, %v959
        %961 = vmatprep.mubr.f32.mxu0 0.0
        %v962 = vand.u32 %v274, 4294901760
        %963 = vmatmul.mubr.f32.gmra.mxu0 %v962
        %v964 = vpop.f32.mrf.mxu0
        %v965 = vadd.f32 %v824, %v964
        %v966 = vpop.f32.mrf.mxu0
        %v967 = vadd.f32 %v826, %v966
        %968 = vmatprep.mubr.f32.mxu0 0.0
        %v969 = vand.u32 %v277, 4294901760
        %970 = vmatmul.mubr.f32.gmra.mxu0 %v969
        %v971 = vpop.f32.mrf.mxu0
        %v972 = vadd.f32 %v833, %v971
        %v973 = vpop.f32.mrf.mxu0
        %v974 = vadd.f32 %v835, %v973
        %975 = vmatprep.mubr.f32.mxu0 0.0
        %v976 = vand.u32 %v280, 4294901760
        %977 = vmatmul.mubr.f32.gmra.mxu0 %v976
        %v978 = vpop.f32.mrf.mxu0
        %v979 = vadd.f32 %v842, %v978
        %v980 = vpop.f32.mrf.mxu0
        %v981 = vadd.f32 %v844, %v980
        %982 = vmatprep.mubr.f32.mxu0 0.0
        %v983 = vand.u32 %v283, 4294901760
        %984 = vmatmul.mubr.f32.gmra.mxu0 %v983
        %v985 = vpop.f32.mrf.mxu0
        %v986 = vadd.f32 %v851, %v985
        %v987 = vpop.f32.mrf.mxu0
        %v988 = vadd.f32 %v853, %v987
        %989 = vmatprep.mubr.f32.mxu0 0.0
        %v990 = vand.u32 %v286, 4294901760
        %991 = vmatmul.mubr.f32.gmra.mxu0 %v990
        %v992 = vpop.f32.mrf.mxu0
        %v993 = vadd.f32 %v860, %v992
        %v994 = vpop.f32.mrf.mxu0
        %v995 = vadd.f32 %v862, %v994
        %996 = vdwg.mxu0
        %997 = vmatprep.subr.mxu0 0.0
        %998 = vmatpush1.msra.mxu0 0.0
        %999 = vmatprep.subr.mxu0 0.0
        %1000 = vmatpush1.msra.mxu0 0.0
        %1001 = vmatprep.subr.mxu0 0.0
        %1002 = vmatpush1.msra.mxu0 0.0
        %1003 = vmatprep.subr.mxu0 0.0
        %1004 = vmatpush1.msra.mxu0 0.0
        %1005 = vmatprep.subr.mxu0 0.0
        %1006 = vmatpush1.msra.mxu0 0.0
        %1007 = vmatprep.subr.mxu0 0.0
        %1008 = vmatpush1.msra.mxu0 0.0
        %1009 = vmatprep.subr.mxu0 0.0
        %1010 = vmatpush1.msra.mxu0 0.0
        %1011 = vmatprep.subr.mxu0 0.0
        %1012 = vmatpush1.msra.mxu0 0.0
        %1013 = vmatprep.subr.mxu0 0.0
        %1014 = vmatpush1.msra.mxu0 0.0
        %1015 = vmatprep.subr.mxu0 0.0
        %1016 = vmatpush1.msra.mxu0 0.0
        %1017 = vmatprep.subr.mxu0 0.0
        %1018 = vmatpush1.msra.mxu0 0.0
        %1019 = vmatprep.subr.mxu0 0.0
        %1020 = vmatpush1.msra.mxu0 0.0
        %1021 = vmatprep.subr.mxu0 0.0
        %1022 = vmatpush1.msra.mxu0 0.0
        %1023 = vmatprep.subr.mxu0 0.0
        %1024 = vmatpush1.msra.mxu0 0.0
        %v1025 = vand.u32 %v227, 4294901760
        %1026 = vmatprep.subr.mxu0 %v1025
        %v1027 = vand.u32 %v226, 4294901760
        %1028 = vmatpush1.msra.mxu0 %v1027
        %v1029 = vand.u32 %v225, 4294901760
        %1030 = vmatprep.subr.mxu0 %v1029
        %v1031 = vand.u32 %v224, 4294901760
        %1032 = vmatpush1.msra.mxu0 %v1031
        %1033 = vmatprep.subr.mxu0 0.0
        %1034 = vmatpush2.msra.mxu0 0.0
        %1035 = vmatprep.subr.mxu0 0.0
        %1036 = vmatpush2.msra.mxu0 0.0
        %1037 = vmatprep.subr.mxu0 0.0
        %1038 = vmatpush2.msra.mxu0 0.0
        %1039 = vmatprep.subr.mxu0 0.0
        %1040 = vmatpush2.msra.mxu0 0.0
        %1041 = vmatprep.subr.mxu0 0.0
        %1042 = vmatpush2.msra.mxu0 0.0
        %1043 = vmatprep.subr.mxu0 0.0
        %1044 = vmatpush2.msra.mxu0 0.0
        %1045 = vmatprep.subr.mxu0 0.0
        %1046 = vmatpush2.msra.mxu0 0.0
        %1047 = vmatprep.subr.mxu0 0.0
        %1048 = vmatpush2.msra.mxu0 0.0
        %1049 = vmatprep.subr.mxu0 0.0
        %1050 = vmatpush2.msra.mxu0 0.0
        %1051 = vmatprep.subr.mxu0 0.0
        %1052 = vmatpush2.msra.mxu0 0.0
        %1053 = vmatprep.subr.mxu0 0.0
        %1054 = vmatpush2.msra.mxu0 0.0
        %1055 = vmatprep.subr.mxu0 0.0
        %1056 = vmatpush2.msra.mxu0 0.0
        %1057 = vmatprep.subr.mxu0 0.0
        %1058 = vmatpush2.msra.mxu0 0.0
        %1059 = vmatprep.subr.mxu0 0.0
        %1060 = vmatpush2.msra.mxu0 0.0
        %1061 = vmatprep.subr.mxu0 0.0
        %1062 = vmatpush2.msra.mxu0 0.0
        %1063 = vmatprep.subr.mxu0 0.0
        %1064 = vmatpush2.msra.mxu0 0.0
        %1065 = vmatprep.mubr.f32.mxu0 0.0
        %v1066 = vand.u32 %v265, 4294901760
        %1067 = vmatmul.mubr.f32.gmra.mxu0 %v1066
        %v1068 = vpop.f32.mrf.mxu0
        %v1069 = vadd.f32 %v944, %v1068
        %v1070 = vpop.f32.mrf.mxu0
        %v1071 = vadd.f32 %v946, %v1070
        %1072 = vmatprep.mubr.f32.mxu0 0.0
        %v1073 = vand.u32 %v268, 4294901760
        %1074 = vmatmul.mubr.f32.gmra.mxu0 %v1073
        %v1075 = vpop.f32.mrf.mxu0
        %v1076 = vadd.f32 %v951, %v1075
        %v1077 = vpop.f32.mrf.mxu0
        %v1078 = vadd.f32 %v953, %v1077
        %1079 = vmatprep.mubr.f32.mxu0 0.0
        %v1080 = vand.u32 %v271, 4294901760
        %1081 = vmatmul.mubr.f32.gmra.mxu0 %v1080
        %v1082 = vpop.f32.mrf.mxu0
        %v1083 = vadd.f32 %v958, %v1082
        %v1084 = vpop.f32.mrf.mxu0
        %v1085 = vadd.f32 %v960, %v1084
        %1086 = vmatprep.mubr.f32.mxu0 0.0
        %v1087 = vand.u32 %v274, 4294901760
        %1088 = vmatmul.mubr.f32.gmra.mxu0 %v1087
        %v1089 = vpop.f32.mrf.mxu0
        %v1090 = vadd.f32 %v965, %v1089
        %v1091 = vpop.f32.mrf.mxu0
        %v1092 = vadd.f32 %v967, %v1091
        %1093 = vmatprep.mubr.f32.mxu0 0.0
        %v1094 = vand.u32 %v277, 4294901760
        %1095 = vmatmul.mubr.f32.gmra.mxu0 %v1094
        %v1096 = vpop.f32.mrf.mxu0
        %v1097 = vadd.f32 %v972, %v1096
        %v1098 = vpop.f32.mrf.mxu0
        %v1099 = vadd.f32 %v974, %v1098
        %1100 = vmatprep.mubr.f32.mxu0 0.0
        %v1101 = vand.u32 %v280, 4294901760
        %1102 = vmatmul.mubr.f32.gmra.mxu0 %v1101
        %v1103 = vpop.f32.mrf.mxu0
        %v1104 = vadd.f32 %v979, %v1103
        %v1105 = vpop.f32.mrf.mxu0
        %v1106 = vadd.f32 %v981, %v1105
        %1107 = vmatprep.mubr.f32.mxu0 0.0
        %v1108 = vand.u32 %v283, 4294901760
        %1109 = vmatmul.mubr.f32.gmra.mxu0 %v1108
        %v1110 = vpop.f32.mrf.mxu0
        %v1111 = vadd.f32 %v986, %v1110
        %v1112 = vpop.f32.mrf.mxu0
        %v1113 = vadd.f32 %v988, %v1112
        %1114 = vmatprep.mubr.f32.mxu0 0.0
        %v1115 = vand.u32 %v286, 4294901760
        %1116 = vmatmul.mubr.f32.gmra.mxu0 %v1115
        %v1117 = vpop.f32.mrf.mxu0
        %v1118 = vadd.f32 %v993, %v1117
        %v1119 = vpop.f32.mrf.mxu0
        %v1120 = vadd.f32 %v995, %v1119
        %1121 = vdwg.mxu0
        %v1122 = vmul.f32 %v1069, %v251
        %v1123 = vmul.f32 %v1071, %v252
        %v1124 = vmul.f32 %v1076, %v253
        %v1125 = vmul.f32 %v1078, %v254
        %v1126 = vmul.f32 %v1083, %v251
        %v1127 = vmul.f32 %v1085, %v252
        %v1128 = vmul.f32 %v1090, %v253
        %v1129 = vmul.f32 %v1092, %v254
        %v1130 = vmul.f32 %v1097, %v251
        %v1131 = vmul.f32 %v1099, %v252
        %v1132 = vmul.f32 %v1104, %v253
        %v1133 = vmul.f32 %v1106, %v254
        %v1134 = vmul.f32 %v1111, %v251
        %v1135 = vmul.f32 %v1113, %v252
        %v1136 = vmul.f32 %v1118, %v253
        %v1137 = vmul.f32 %v1120, %v254
        %v1138 = vadd.f32 %v1122, %v1124
        %v1139 = vrot.slane %v1138, 4
        %v1140 = vadd.f32 %v1138, %v1139
        %v1141 = vrot.slane %v1140, 2
        %v1142 = vadd.f32 %v1140, %v1141
        %v1143 = vrot.slane %v1142, 1
        %v1144 = vadd.f32 %v1142, %v1143
        %v1145 = vadd.f32 %v1123, %v1125
        %v1146 = vrot.slane %v1145, 4
        %v1147 = vadd.f32 %v1145, %v1146
        %v1148 = vrot.slane %v1147, 2
        %v1149 = vadd.f32 %v1147, %v1148
        %v1150 = vrot.slane %v1149, 1
        %v1151 = vadd.f32 %v1149, %v1150
        %v1152 = vadd.f32 %v1126, %v1128
        %v1153 = vrot.slane %v1152, 4
        %v1154 = vadd.f32 %v1152, %v1153
        %v1155 = vrot.slane %v1154, 2
        %v1156 = vadd.f32 %v1154, %v1155
        %v1157 = vrot.slane %v1156, 1
        %v1158 = vadd.f32 %v1156, %v1157
        %v1159 = vadd.f32 %v1127, %v1129
        %v1160 = vrot.slane %v1159, 4
        %v1161 = vadd.f32 %v1159, %v1160
        %v1162 = vrot.slane %v1161, 2
        %v1163 = vadd.f32 %v1161, %v1162
        %v1164 = vrot.slane %v1163, 1
        %v1165 = vadd.f32 %v1163, %v1164
        %v1166 = vadd.f32 %v1130, %v1132
        %v1167 = vrot.slane %v1166, 4
        %v1168 = vadd.f32 %v1166, %v1167
        %v1169 = vrot.slane %v1168, 2
        %v1170 = vadd.f32 %v1168, %v1169
        %v1171 = vrot.slane %v1170, 1
        %v1172 = vadd.f32 %v1170, %v1171
        %v1173 = vadd.f32 %v1131, %v1133
        %v1174 = vrot.slane %v1173, 4
        %v1175 = vadd.f32 %v1173, %v1174
        %v1176 = vrot.slane %v1175, 2
        %v1177 = vadd.f32 %v1175, %v1176
        %v1178 = vrot.slane %v1177, 1
        %v1179 = vadd.f32 %v1177, %v1178
        %v1180 = vadd.f32 %v1134, %v1136
        %v1181 = vrot.slane %v1180, 4
        %v1182 = vadd.f32 %v1180, %v1181
        %v1183 = vrot.slane %v1182, 2
        %v1184 = vadd.f32 %v1182, %v1183
        %v1185 = vrot.slane %v1184, 1
        %v1186 = vadd.f32 %v1184, %v1185
        %v1187 = vadd.f32 %v1135, %v1137
        %v1188 = vrot.slane %v1187, 4
        %v1189 = vadd.f32 %v1187, %v1188
        %v1190 = vrot.slane %v1189, 2
        %v1191 = vadd.f32 %v1189, %v1190
        %v1192 = vrot.slane %v1191, 1
        %v1193 = vadd.f32 %v1191, %v1192
        %v1202 = vcombine.low %v1144, %v1151
        %v1203 = vcombine.low %v1158, %v1165
        %v1204 = vcombine.low %v1172, %v1179
        %v1205 = vcombine.low %v1186, %v1193
        %v1206 = vrot.slane %v1203, 7
        %vm1207 = vcmask 1041409
        %v1208 = vsel %vm1207, %v1206, %v1202
        %vm1209 = vcmask 1045509
        %v1210 = vsel %vm1209, %v1206, %v1208
        %v1211 = vrot.slane %v1204, 6
        %vm1212 = vcmask 1042434
        %v1213 = vsel %vm1212, %v1211, %v1210
        %vm1214 = vcmask 1046534
        %v1215 = vsel %vm1214, %v1211, %v1213
        %v1216 = vrot.slane %v1205, 5
        %vm1217 = vcmask 1043459
        %v1218 = vsel %vm1217, %v1216, %v1215
        %vm1219 = vcmask 1047559
        %v1220 = vsel %vm1219, %v1216, %v1218
        %1222 = vst [vmem:[%s176] sm:$0xff] %v1220
        %s1223 = sand.u32 %s92, 1
        %s1224 = scalar_lea.sflag [#allocation3], %s1223
        %s1225 = sand.u32 %s92, 1
        %s1226 = smul.addr %s1225, 8
        %s1227 = scalar_lea.vmem [#allocation2], %s1226
        // Predicated region
        $region29: #{tpu_custom_call.1} parent=27 // pred_check
          %p1228 = pneg %p102
        $region30: #{tpu_custom_call.1} parent=27 // pred_check_branch
          %1230 = sbr.rel (%p1228) target = $region32
        $region31: #{tpu_custom_call.1} parent=27 // pred_region
          %s1231 = smul.u32 2, %s21
          %s1233 = ssub.s32 128, 128
          %1234 = vsyncadd %s1224, %s1233
          %s1235 = smul.addr %s20, 2
          %s1236 = sadd.s32 %s1231, %s1235
          %s1237 = smul.addr %s1236, 64
          %s1238 = scalar_lea.hbm %s2, %s1237
          %s1240 = sshll.u32 %s1227, 4
          %s1241 = int_to_ptr.vmem [resolvable:$true] %s1240
          %1243 = dma.vmem_to_hbm [thread:$0]  %s1241, 128, %s1238, %s1224
        $region32: #{tpu_custom_call.1} parent=27 // pred_fallthru
          _
      $region28: #{tpu_custom_call.1} parent=5 // pred_fallthru
        _
      %p1244 = scmp.le.s32.totalorder 2, %s11
      // Predicated region
      $region33: #{tpu_custom_call.1} parent=5 // pred_check
        %p1245 = pneg %p1244
      $region34: #{tpu_custom_call.1} parent=5 // pred_check_branch
        %1247 = sbr.rel (%p1245) target = $region36
      $region35: #{tpu_custom_call.1} parent=5 // pred_region
        %s1248 = ssub.s32 %s11, 2
        // Predicated region
        $region37: #{tpu_custom_call.1} parent=35 // pred_check
          %p1249 = pneg %p108
        $region38: #{tpu_custom_call.1} parent=35 // pred_check_branch
          %1251 = sbr.rel (%p1249) target = $region40
        $region39: #{tpu_custom_call.1} parent=35 // pred_region
          %s1252 = sand.u32 %s93, 1
          %s1253 = scalar_lea.sflag [#allocation3], %s1252
          %s1254 = sand.u32 %s93, 1
          %s1255 = smul.addr %s1254, 8
          %s1256 = scalar_lea.vmem [#allocation2], %s1255
          %1257 = dma.done %s1253, 128
        $region40: #{tpu_custom_call.1} parent=35 // pred_fallthru
          _
      $region36: #{tpu_custom_call.1} parent=5 // pred_fallthru
        _
    $region6: #{tpu_custom_call.1} parent=1 // loop_footer
      %s15 = sadd.s32 1, %s11
    $region7: #{tpu_custom_call.1} parent=1 // loop_footer_branch
      %10 = sbr.rel target = $region3
    $region8: #{tpu_custom_call.1} parent=1 // loop_exit
      _
    %1258 = vsyncpa [#allocation3], 1
    %s1259 = scalar_lea.sflag [#allocation3], 1
    %1260 = vsyncpa %s1259, 1

</llo_original>
